<compile_context>
chip_gen: v7x
topology: tpu7x:2x2x1
jax: 0.10.0
libtpu: 0.0.40
codegen_flags: <defaults>
</compile_context>

<pallas_src>
import jax
import jax.numpy as jnp
from jax.experimental import pallas as pl
from jax.experimental.pallas import tpu as pltpu

LANES = 128
_TILE_BYTES = 2 * 1024 * 1024  # target DMA size per tile buffer (~2 MiB)


# ----------------------------------------------------------------------------
# Pallas kernel: a = -(e0 + e1 * tanh((z - e2) * e3))
# ----------------------------------------------------------------------------
def invrt_kernel(eta_ref, z_ref, o_ref):
    # eta_ref: (4,) f32 in SMEM; z_ref / o_ref: (TM, 128) tiles in VMEM.
    e0 = eta_ref[0]
    e1 = eta_ref[1]
    e2 = eta_ref[2]
    e3 = eta_ref[3]
    # Upcast in-vreg (no-op for f32 inputs; needed on v5e for bf16 inputs).
    z = z_ref[...].astype(jnp.float32)
    o_ref[...] = (-(e0 + e1 * jnp.tanh((z - e2) * e3))).astype(o_ref.dtype)


def _invrt_pallas_2d(z2d, eta_f32):
    """Run the elementwise kernel over a lane-dense (M, 128) slab."""
    M = z2d.shape[0]
    itemsize = jnp.dtype(z2d.dtype).itemsize
    # ~2 MiB per tile buffer: 4096 rows for f32, 8192 rows for bf16.
    tm = max(8, _TILE_BYTES // (LANES * itemsize))
    if M >= 16:
        # Guarantee >= 2 grid steps so the "parallel" axis can shard across
        # both v7x TensorCores (no effect on single-TC v5e/v6e).
        tm_eff = min(tm, 8 * pl.cdiv(pl.cdiv(M, 2), 8))
    else:
        tm_eff = M  # block dim equals full dim -> (8,128) rule satisfied
    grid = (pl.cdiv(M, tm_eff),)  # ragged last block handled by masked writes

    return pl.pallas_call(
        invrt_kernel,
        out_shape=jax.ShapeDtypeStruct((M, LANES), z2d.dtype),
        grid_spec=pltpu.PrefetchScalarGridSpec(
            num_scalar_prefetch=0,
            grid=grid,
            in_specs=[
                pl.BlockSpec(memory_space=pltpu.MemorySpace.SMEM),  # eta (4,)
                pl.BlockSpec((tm_eff, LANES), lambda i: (i, 0)),    # z tile
            ],
            out_specs=pl.BlockSpec((tm_eff, LANES), lambda i: (i, 0)),
        ),
        compiler_params=pltpu.CompilerParams(
            dimension_semantics=("parallel",),  # shard grid over TCs on v7x
        ),
    )(eta_f32, z2d)


def invrt_forward(z, eta):
    """Apply the InvRT activation elementwise to z (Pallas TPU kernel)."""
    orig_shape = z.shape
    orig_dtype = z.dtype

    # bf16/f32 stream as-is through HBM/VMEM; everything else goes through f32.
    if orig_dtype in (jnp.float32, jnp.bfloat16):
        stream_dtype = orig_dtype
    else:
        stream_dtype = jnp.float32

    eta_f32 = eta.astype(jnp.float32)
    flat = z.reshape(-1).astype(stream_dtype)
    n = flat.shape[0]
    n_main = (n // LANES) * LANES   # static
    tail = n - n_main               # static, < 128

    parts = []
    if n_main:
        z2d = (flat[:n_main] if tail else flat).reshape(-1, LANES)
        parts.append(_invrt_pallas_2d(z2d, eta_f32).reshape(-1))
    if tail:
        # <128-element ragged tail: trivial fused JAX expression, no pad/slice
        # round trip through HBM for the main slab.
        zt = flat[n_main:].astype(jnp.float32)
        at = -(eta_f32[0] + eta_f32[1] * jnp.tanh((zt - eta_f32[2]) * eta_f32[3]))
        parts.append(at.astype(stream_dtype))

    if not parts:
        out = flat
    elif len(parts) == 1:
        out = parts[0]
    else:
        out = jnp.concatenate(parts)
    return out.reshape(orig_shape).astype(orig_dtype)


# ----------------------------------------------------------------------------
# Glue: eta pipeline (sigmoid -> RT -> RTn_extend -> MLP -> denorm), plain JAX.
# ----------------------------------------------------------------------------
def compute_eta(rt_, X_min, X_max, Y_min, Y_max, w1, b1, w2, b2):
    rt_temp = jax.nn.sigmoid(rt_)                       # (9,)
    RTn = jnp.zeros(12, jnp.float32).at[:9].set(rt_temp)
    RT = RTn * (X_max - X_min) + X_min                  # (12,)
    RT_extend = jnp.concatenate(
        [RT[:9],
         jnp.stack([RT[3] / RT[4], RT[5] / RT[6], RT[7] / RT[8]])]
    )                                                   # (12,)
    RTn_extend = (RT_extend - X_min) / (X_max - X_min)  # (12,)

    # TODO(synk): exact eta_estimator architecture lives in the
    # './utils/neg_param.package' checkpoint; a deterministic tanh/sigmoid MLP
    # of matching I/O (12 -> 32 -> 4) is used as a stand-in.
    h = jnp.tanh(RTn_extend @ w1 + b1)                  # (32,)
    eta_n = jax.nn.sigmoid(h @ w2 + b2)                 # (4,)
    eta = eta_n * (Y_max - Y_min) + Y_min               # (4,)
    return eta


# Single jitted entry point: eta pipeline + wrapper glue + pallas_call fuse into
# one executable (kills per-call host dispatch of the tiny ops).
@jax.jit
def invrt_apply(z, rt_, X_min, X_max, Y_min, Y_max, w1, b1, w2, b2):
    eta = compute_eta(rt_, X_min, X_max, Y_min, Y_max, w1, b1, w2, b2)
    return invrt_forward(z, eta)


if __name__ == "__main__":
    key = jax.random.PRNGKey(0)
    keys = jax.random.split(key, 9)

    # Parameters (deterministic, synthetic; shapes per module __init__ / usage).
    rt_ = jax.random.normal(keys[0], (9,), jnp.float32)                   # 9 circuit params
    X_min = jax.random.uniform(keys[1], (12,), jnp.float32, 0.1, 0.5)
    X_max = X_min + jax.random.uniform(keys[2], (12,), jnp.float32, 0.5, 1.5)
    Y_min = jax.random.uniform(keys[3], (4,), jnp.float32, -0.5, 0.0)
    Y_max = Y_min + jax.random.uniform(keys[4], (4,), jnp.float32, 0.5, 1.5)

    HID = 32
    w1 = 0.1 * jax.random.normal(keys[5], (12, HID), jnp.float32)
    b1 = jnp.zeros((HID,), jnp.float32)
    w2 = 0.1 * jax.random.normal(keys[6], (HID, 4), jnp.float32)
    b2 = jnp.zeros((4,), jnp.float32)

    params = (rt_, X_min, X_max, Y_min, Y_max, w1, b1, w2, b2)
    eta = compute_eta(*params)  # for reference checks

    # ---- Test 1: lane-divisible f32 NCHW tensor (2048 elems -> 2 grid steps).
    z = jax.random.normal(keys[7], (2, 4, 16, 16), jnp.float32)
    out = jax.block_until_ready(invrt_apply(z, *params))
    ref = -(eta[0] + eta[1] * jnp.tanh((z - eta[2]) * eta[3]))
    assert out.shape == z.shape and out.dtype == z.dtype
    assert jnp.allclose(out, ref, atol=1e-5, rtol=1e-5)

    # ---- Test 2: bf16, non-lane-divisible (5000 elems): kernel prefix with a
    # ragged last grid block + <128-element JAX tail, no pad round trip.
    z2 = jax.random.normal(keys[8], (5, 1000), jnp.float32).astype(jnp.bfloat16)
    out2 = jax.block_until_ready(invrt_apply(z2, *params))
    ref2 = (-(eta[0] + eta[1] * jnp.tanh((z2.astype(jnp.float32) - eta[2]) * eta[3]))
            ).astype(jnp.bfloat16)
    assert out2.shape == z2.shape and out2.dtype == z2.dtype
    assert jnp.allclose(out2.astype(jnp.float32), ref2.astype(jnp.float32),
                        atol=2e-2, rtol=2e-2)

    print("KERNEL_OK")
</pallas_src>

<mosaic_0001>
module attributes {stable_mosaic.version = 11 : i64} {
  func.func @invrt_kernel(%arg0: i32, %arg1: memref<4xf32, #tpu.memory_space<smem>>, %arg2: memref<8x128xf32, #tpu.memory_space<vmem>>, %arg3: memref<8x128xf32, #tpu.memory_space<vmem>>) attributes {dimension_semantics = [#tpu.dimension_semantics<parallel>], iteration_bounds = array<i64: 2>, scalar_prefetch = 0 : i64, scratch_operands = 0 : i64, tpu.core_type = #tpu.core_type<tc>, window_params = [{transform_indices = @transform_0, window_bounds = array<i64: 4>}, {transform_indices = @transform_1, window_bounds = array<i64: 8, 128>}, {transform_indices = @transform_2, window_bounds = array<i64: 8, 128>}]} {
    %c0 = arith.constant 0 : index
    %0 = memref.load %arg1[%c0] : memref<4xf32, #tpu.memory_space<smem>>
    %c1 = arith.constant 1 : index
    %1 = memref.load %arg1[%c1] : memref<4xf32, #tpu.memory_space<smem>>
    %c2 = arith.constant 2 : index
    %2 = memref.load %arg1[%c2] : memref<4xf32, #tpu.memory_space<smem>>
    %c3 = arith.constant 3 : index
    %3 = memref.load %arg1[%c3] : memref<4xf32, #tpu.memory_space<smem>>
    %c0_0 = arith.constant 0 : index
    %c0_1 = arith.constant 0 : index
    %4 = vector.load %arg2[%c0_0, %c0_1] : memref<8x128xf32, #tpu.memory_space<vmem>>, vector<8x128xf32>
    %5 = vector.broadcast %2 : f32 to vector<8x128xf32>
    %6 = arith.subf %4, %5 : vector<8x128xf32>
    %7 = vector.broadcast %3 : f32 to vector<8x128xf32>
    %8 = arith.mulf %6, %7 : vector<8x128xf32>
    %9 = math.tanh %8 : vector<8x128xf32>
    %10 = vector.broadcast %1 : f32 to vector<8x128xf32>
    %11 = arith.mulf %10, %9 : vector<8x128xf32>
    %12 = vector.broadcast %0 : f32 to vector<8x128xf32>
    %13 = arith.addf %12, %11 : vector<8x128xf32>
    %cst = arith.constant 0.000000e+00 : f32
    %14 = vector.broadcast %cst : f32 to vector<8x128xf32>
    %15 = arith.subf %14, %13 : vector<8x128xf32>
    %c0_2 = arith.constant 0 : index
    %c0_3 = arith.constant 0 : index
    %16 = vector.load %arg3[%c0_2, %c0_3] : memref<8x128xf32, #tpu.memory_space<vmem>>, vector<8x128xf32>
    tpu.vector_store %arg3[%c0_2, %c0_3], %15 {strides = array<i32>} : memref<8x128xf32, #tpu.memory_space<vmem>>, vector<8x128xf32>,
    return
  }
  func.func @transform_0(%arg0: i32) -> i32 {
    %c0_i32 = arith.constant 0 : i32
    %c0_i32_0 = arith.constant 0 : i32
    return %c0_i32 : i32
  }
  func.func @transform_1(%arg0: i32) -> (i32, i32) {
    %c0_i32 = arith.constant 0 : i32
    %c0_i32_0 = arith.constant 0 : i32
    return %arg0, %c0_i32 : i32, i32
  }
  func.func @transform_2(%arg0: i32) -> (i32, i32) {
    %c0_i32 = arith.constant 0 : i32
    %c0_i32_0 = arith.constant 0 : i32
    return %arg0, %c0_i32 : i32, i32
  }
}

</mosaic_0001>

<llo_original>
// kernel: invrt_apply.1
$region0: #{invrt_apply.1}
  #allocation0 [shape = 'u32[]', space=smem, size = 0x4, offset = 0x4, fixed_abs, tag = 'smem constant byte address 0x4 - core index']
  #allocation1 [shape = 'u32[144,128]{1,0:T(1,128)}', space=vmem, size = 0x12000, scoped, tag = 'internal scratch']
  %s0 = inlined_call_operand.vmem [shape: f32[4], index: 0, kind: input, shape index: {}]
  %s1 = inlined_call_operand.vmem [shape: f32[16,128], index: 1, kind: input, shape index: {}]
  %s2 = inlined_call_operand.vmem [shape: f32[16,128], index: 2, kind: output, shape index: {}]
  %s3 = sld [smem:[#allocation0]]
  $region45: #{invrt_apply.1} parent=0
    _
  %s5 = ssub.s32 1, %s3
  %s6 = scalar_select 0, %s5, %s3
  $region1: #{invrt_apply.1} parent=0
    #allocation2 [shape = 'u8[512]{0}', space=smem, size = 0x200, scoped, tag = 'input window, operand 0, single buffered']
    #allocation3 [shape = 's32[2]{0}', space=sflag, size = 0x8, scoped, tag = 'scoped memory for invrt_apply.1']
    %7 = vsyncpa [#allocation3], 0
    loop: start=0, step=1, limit=4
    $region2: #{invrt_apply.1} parent=1 // loop_pre_header
      _
    $region3: #{invrt_apply.1} parent=1 // loop_header
      %s9 = sphi 0, %s13
      %p10 = scmp.ge.s32.totalorder %s9, 4
      %s17 = sphi 0, %s17
      %s19 = sphi 0, %s17
      %s20 = sphi 0, %s19
      %s34 = sphi 0, %s20
      %s40 = sphi 0, %s42
      %s43 = sphi 0, %s40
      %s44 = sphi 0, %s43
      %s60 = sphi 0, %s44
      %s66 = sphi 0, %s68
      %s69 = sphi 0, %s66
      %s70 = sphi 0, %s69
      %s86 = sphi 0, %s70
    $region4: #{invrt_apply.1} parent=1 // loop_header_branch
      %12 = sbr.rel (%p10) target = $region8
    $region5: #{invrt_apply.1} parent=1 // loop_body
      %s14 = ssub.s32 %s9, 1
      %s15 = ssub.s32 %s9, 2
      %s16 = sadd.s32 %s9, 1
      %s18 = sadd.s32 %s17, 1
      %p21 = scmp.eq.s32.totalorder %s9, 1
      %p22 = scmp.ne.s32.totalorder %s17, %s19
      %p23 = scmp.eq.s32.totalorder %s9, 0
      %p24 = por %p22, %p23
      %p25 = scmp.ne.s32.totalorder %s17, %s19
      %p26 = scmp.eq.s32.totalorder %s14, 1
      %p27 = por %p25, %p26
      %p28 = scmp.ne.s32.totalorder %s19, %s20
      %p29 = scmp.eq.s32.totalorder %s14, 0
      %p30 = por %p28, %p29
      %p31 = scmp.ne.s32.totalorder %s19, %s20
      %p32 = scmp.eq.s32.totalorder %s15, 1
      %p33 = por %p31, %p32
      %p35 = scmp.ne.s32.totalorder %s20, %s34
      %p36 = scmp.eq.s32.totalorder %s15, 0
      %p37 = por %p35, %p36
      %s38 = ssub.s32 %s9, %s16
      %p39 = scmp.eq.s32.totalorder %s38, 0
      %s41 = sadd.s32 %s40, 1
      %s42 = scalar_select %p39, %s40, %s41
      %p45 = pneg %p39
      %p46 = scmp.eq.s32.totalorder %s9, 1
      %p47 = por %p45, %p46
      %p48 = scmp.ne.s32.totalorder %s40, %s43
      %p49 = scmp.eq.s32.totalorder %s9, 0
      %p50 = por %p48, %p49
      %p51 = scmp.ne.s32.totalorder %s40, %s43
      %p52 = scmp.eq.s32.totalorder %s14, 1
      %p53 = por %p51, %p52
      %p54 = scmp.ne.s32.totalorder %s43, %s44
      %p55 = scmp.eq.s32.totalorder %s14, 0
      %p56 = por %p54, %p55
      %p57 = scmp.ne.s32.totalorder %s43, %s44
      %p58 = scmp.eq.s32.totalorder %s15, 1
      %p59 = por %p57, %p58
      %p61 = scmp.ne.s32.totalorder %s44, %s60
      %p62 = scmp.eq.s32.totalorder %s15, 0
      %p63 = por %p61, %p62
      %s64 = ssub.s32 %s9, %s16
      %p65 = scmp.eq.s32.totalorder %s64, 0
      %s67 = sadd.s32 %s66, 1
      %s68 = scalar_select %p65, %s66, %s67
      %p71 = pneg %p65
      %p72 = scmp.eq.s32.totalorder %s9, 1
      %p73 = por %p71, %p72
      %p74 = scmp.ne.s32.totalorder %s66, %s69
      %p75 = scmp.eq.s32.totalorder %s9, 0
      %p76 = por %p74, %p75
      %p77 = scmp.ne.s32.totalorder %s66, %s69
      %p78 = scmp.eq.s32.totalorder %s14, 1
      %p79 = por %p77, %p78
      %p80 = scmp.ne.s32.totalorder %s69, %s70
      %p81 = scmp.eq.s32.totalorder %s14, 0
      %p82 = por %p80, %p81
      %p83 = scmp.ne.s32.totalorder %s69, %s70
      %p84 = scmp.eq.s32.totalorder %s15, 1
      %p85 = por %p83, %p84
      %p87 = scmp.ne.s32.totalorder %s70, %s86
      %p88 = scmp.eq.s32.totalorder %s15, 0
      %p89 = por %p87, %p88
      %p90 = scmp.le.s32.totalorder 1, %s9
      %p91 = scmp.lt.s32.totalorder %s9, 3
      %p92 = pnand %p90, %p91
      %p93 = pneg %p92
      // Predicated region
      $region9: #{invrt_apply.1} parent=5 // pred_check
        _
      $region10: #{invrt_apply.1} parent=5 // pred_check_branch
        %95 = sbr.rel (%p92) target = $region12
      $region11: #{invrt_apply.1} parent=5 // pred_region
        %s96 = ssub.s32 %s9, 1
        // Predicated region
        $region13: #{invrt_apply.1} parent=11 // pred_check
          %p97 = pneg %p30
        $region14: #{invrt_apply.1} parent=11 // pred_check_branch
          %99 = sbr.rel (%p97) target = $region16
        $region15: #{invrt_apply.1} parent=11 // pred_region
          %s101 = ssub.s32 16, 16
          %102 = vsyncadd [#allocation3], %s101
          %s104 = sshll.u32 %s0, 4
          %s105 = int_to_ptr.vmem [resolvable:$true] %s104
          %107 = dma.vmem_to_smem %s105, 16, [#allocation2], [#allocation3]
        $region16: #{invrt_apply.1} parent=11 // pred_fallthru
          _
      $region12: #{invrt_apply.1} parent=5 // pred_fallthru
        _
      %p108 = scmp.lt.s32.totalorder %s9, 2
      // Predicated region
      $region17: #{invrt_apply.1} parent=5 // pred_check
        %p109 = pneg %p108
      $region18: #{invrt_apply.1} parent=5 // pred_check_branch
        %111 = sbr.rel (%p109) target = $region20
      $region19: #{invrt_apply.1} parent=5 // pred_region
        // Predicated region
        $region21: #{invrt_apply.1} parent=19 // pred_check
          %p112 = pneg %p50
        $region22: #{invrt_apply.1} parent=19 // pred_check_branch
          %114 = sbr.rel (%p112) target = $region24
        $region23: #{invrt_apply.1} parent=19 // pred_region
          %p115 = scmp.lt.s32.totalorder %s9, 1
          %s116 = scalar_select %p115, %s9, 1
          %s117 = smul.addr %s116, 8
          %s118 = scalar_lea.vmem %s1, %s117
        $region24: #{invrt_apply.1} parent=19 // pred_fallthru
          _
      $region20: #{invrt_apply.1} parent=5 // pred_fallthru
        _
      %p119 = scmp.le.s32.totalorder 1, %s9
      %p120 = scmp.lt.s32.totalorder %s9, 3
      %p121 = pnand %p119, %p120
      %p122 = pneg %p121
      // Predicated region
      $region25: #{invrt_apply.1} parent=5 // pred_check
        _
      $region26: #{invrt_apply.1} parent=5 // pred_check_branch
        %124 = sbr.rel (%p121) target = $region28
      $region27: #{invrt_apply.1} parent=5 // pred_region
        %s125 = ssub.s32 %s9, 1
        // Predicated region
        $region29: #{invrt_apply.1} parent=27 // pred_check
          %p126 = pneg %p30
        $region30: #{invrt_apply.1} parent=27 // pred_check_branch
          %128 = sbr.rel (%p126) target = $region32
        $region31: #{invrt_apply.1} parent=27 // pred_region
          %129 = dma.done [#allocation3], 16
        $region32: #{invrt_apply.1} parent=27 // pred_fallthru
          _
        %130 = sfence
        %p131 = pneg %p30
        %p132 = pneg %p27
        %p133 = scmp.lt.s32.totalorder %s14, 1
        %s134 = scalar_select %p133, %s14, 1
        %s135 = smul.addr %s134, 8
        %s136 = scalar_lea.vmem %s1, %s135
        %p137 = pneg %p56
        %p138 = pneg %p53
        %p139 = pneg %p82
        %p140 = pneg %p79
        %p141 = scmp.lt.s32.totalorder %s14, 1
        %s142 = scalar_select %p141, %s14, 1
        %s143 = smul.addr %s142, 8
        %s144 = scalar_lea.vmem %s2, %s143
        %p145 = scmp.lt.s32.totalorder %s14, 1
        %s146 = scalar_select %p145, %s14, 1
        %s147 = smul.addr %s146, 8
        %s148 = scalar_lea.vmem %s1, %s147
        %p149 = scmp.lt.s32.totalorder %s14, 1
        %s150 = scalar_select %p149, %s14, 1
        %s151 = smul.addr %s150, 8
        %s152 = scalar_lea.vmem %s2, %s151
        %s153 = sld [smem:[#allocation2]]
        %s154 = sld [smem:[#allocation2 + $0x1]]
        %s155 = sld [smem:[#allocation2 + $0x2]]
        %s156 = sld [smem:[#allocation2 + $0x3]]
        %v157 = vld [vmem:[%s148] sm:$0xff]
        %v158 = vstv %s155
        %v159 = vsub.f32 %v157, %v158
        %v160 = vstv %s156
        %v161 = vmul.f32 %v159, %v160
        %v162 = vtanh.pop %v161
        %v163 = vstv %s154
        %v164 = vmul.f32 %v163, %v162
        %v165 = vstv %s153
        %v166 = vadd.f32 %v165, %v164
        %v167 = vsub.f32 0.0, %v166
        %168 = vst [vmem:[%s152] sm:$0xff] %v167
        %p169 = scmp.lt.s32.totalorder %s14, 1
        %s170 = scalar_select %p169, %s14, 1
        %s171 = smul.addr %s170, 8
        %s172 = scalar_lea.vmem %s2, %s171
        // Predicated region
        $region33: #{invrt_apply.1} parent=27 // pred_check
          %p173 = pneg %p79
        $region34: #{invrt_apply.1} parent=27 // pred_check_branch
          %175 = sbr.rel (%p173) target = $region36
        $region35: #{invrt_apply.1} parent=27 // pred_region
          _
        $region36: #{invrt_apply.1} parent=27 // pred_fallthru
          _
      $region28: #{invrt_apply.1} parent=5 // pred_fallthru
        _
      %p176 = scmp.le.s32.totalorder 2, %s9
      // Predicated region
      $region37: #{invrt_apply.1} parent=5 // pred_check
        %p177 = pneg %p176
      $region38: #{invrt_apply.1} parent=5 // pred_check_branch
        %179 = sbr.rel (%p177) target = $region40
      $region39: #{invrt_apply.1} parent=5 // pred_region
        %s180 = ssub.s32 %s9, 2
        // Predicated region
        $region41: #{invrt_apply.1} parent=39 // pred_check
          %p181 = pneg %p85
        $region42: #{invrt_apply.1} parent=39 // pred_check_branch
          %183 = sbr.rel (%p181) target = $region44
        $region43: #{invrt_apply.1} parent=39 // pred_region
          %p184 = scmp.lt.s32.totalorder %s15, 1
          %s185 = scalar_select %p184, %s15, 1
          %s186 = smul.addr %s185, 8
          %s187 = scalar_lea.vmem %s2, %s186
        $region44: #{invrt_apply.1} parent=39 // pred_fallthru
          _
      $region40: #{invrt_apply.1} parent=5 // pred_fallthru
        _
    $region6: #{invrt_apply.1} parent=1 // loop_footer
      %s13 = sadd.s32 1, %s9
    $region7: #{invrt_apply.1} parent=1 // loop_footer_branch
      %8 = sbr.rel target = $region3
    $region8: #{invrt_apply.1} parent=1 // loop_exit
      _
    %188 = vsyncpa [#allocation3], 1
    %s189 = scalar_lea.sflag [#allocation3], 1
    %190 = vsyncpa %s189, 1

</llo_original>
